<compile_context>
chip_gen: v6e
topology: v6e:2x2x1
jax: 0.10.0
libtpu: 0.0.40
codegen_flags: <defaults>
</compile_context>

<pallas_src>
import functools

import jax
import jax.numpy as jnp
from jax.experimental import pallas as pl
from jax.experimental.pallas import tpu as pltpu


# ----------------------------- Pallas kernel -------------------------------

def _lip_resblock_kernel(W, x_ref, w1_ref, wd_ref, msk_ref,
                         b1_ref, b2_ref, wcat_ref, b3_ref, o_ref):
    # x_ref   : (Cin,  L)    input block, L = batch_block * H * W (lane-dense)
    # w1_ref  : (Cmid, Cin)  conv1 weight, bn1 scale folded in
    # wd_ref  : (Cmid, 9)    depthwise taps (dy*3+dx), bn2 scale folded in
    # msk_ref : (9, 1, L)    0/1 border masks per tap
    # b1/b2   : (Cmid, 1), wcat: (Cout, Cmid+Cin) = [w3*s3 | wsc], b3: (Cout, 1)
    # o_ref   : (Cout, L)
    _, L = x_ref.shape
    x = x_ref[...]                                               # (Cin, L)

    # ---- conv1 (1x1) + folded bn1 + relu : one MXU call -------------------
    y1 = jnp.dot(w1_ref[...], x, preferred_element_type=jnp.float32)
    y1 = jnp.maximum(y1 + b1_ref[...], 0.0)                      # (Cmid, L)

    # ---- depthwise 3x3 + folded bn2 ----------------------------------------
    # tap(dy,dx)[p] = y1[p + (dy-1)*W + (dx-1)] -> lane roll by -(that shift),
    # zeroed at image borders by the precomputed masks (handles image seams too).
    wd = wd_ref[...]                                             # (Cmid, 9)
    acc = y1 * wd[:, 4:5]                                        # center tap: no roll/mask
    for dy in range(3):
        for dx in range(3):
            if dy == 1 and dx == 1:
                continue
            k = dy * 3 + dx
            shift = ((1 - dy) * W + (1 - dx)) % L                # static XLU lane roll
            tap = pltpu.roll(y1, shift, 1) * msk_ref[k]          # (Cmid,L) * (1,L)
            acc = acc + tap * wd[:, k:k + 1]
    y2 = acc + b2_ref[...]                                       # (Cmid, L)

    # ---- conv3 + shortcut fused into a single MXU call (bn3 scale folded) --
    cat = jnp.concatenate([y2, x], axis=0)                       # (Cmid+Cin, L)
    out = jnp.dot(wcat_ref[...], cat, preferred_element_type=jnp.float32)
    o_ref[...] = jnp.maximum(out + b3_ref[...], 0.0).astype(o_ref.dtype)


# ----------------------------- host wrapper --------------------------------

def _pick_batch_block(N, H, W, Cin, Cmid, Cout, vmem_budget=8 << 20):
    """Largest batch tile that keeps >=2 grid steps (megacore), lane-aligned blocks,
    and an estimated per-step working set under the VMEM budget."""
    per_img = 4 * H * W * (2 * Cin + 4 * Cmid + 2 * Cout)
    cands = [nb for nb in range(1, N + 1)
             if N % nb == 0
             and ((nb * H * W) % 128 == 0 or nb == N)
             and nb * per_img <= vmem_budget]
    if not cands:
        return N
    pref = [nb for nb in cands if N // nb >= 2] or cands
    return max(pref)


def _tap_masks(H, W, nb):
    """(9, 1, nb*H*W) float32 masks: 1.0 where the (dy,dx) tap source is in-image."""
    h = jnp.arange(H, dtype=jnp.int32)[:, None]
    w = jnp.arange(W, dtype=jnp.int32)[None, :]
    rows = []
    for dy in range(3):
        for dx in range(3):
            ok = ((h + (dy - 1) >= 0) & (h + (dy - 1) < H) &
                  (w + (dx - 1) >= 0) & (w + (dx - 1) < W))
            rows.append(jnp.tile(ok.reshape(1, H * W), (1, nb)))
    return jnp.stack(rows, axis=0).astype(jnp.float32)           # (9, 1, nb*H*W)


def lip_resblock(x_nhwc, params, *, stride=1, batch_block=None):
    """x_nhwc: (N, H, W, Cin) float32. Returns (N, Ho, Wo, Cout) float32."""
    w1, wd, w3, wsc, s1, b1, s2, b2, s3, b3 = params
    N, H, W, Cin = x_nhwc.shape
    Cmid = w1.shape[1]
    Cout = w3.shape[1]

    # ---- fold BN scales into the weights (host side) ----------------------
    w1f = (w1 * s1[None, :]).T.astype(jnp.float32)               # (Cmid, Cin)
    wd_s = (wd * s2[None, None, :]).reshape(9, Cmid).T.astype(jnp.float32)   # (Cmid, 9)
    wcat = jnp.concatenate([(w3 * s3[None, :]).T, wsc.T], axis=1).astype(jnp.float32)
    b1c = b1.reshape(Cmid, 1).astype(jnp.float32)
    b2c = b2.reshape(Cmid, 1).astype(jnp.float32)
    b3c = b3.reshape(Cout, 1).astype(jnp.float32)

    # ---- channels-in-sublane, batch*spatial-in-lane layout -----------------
    x2d = jnp.transpose(x_nhwc, (3, 0, 1, 2)).reshape(Cin, N * H * W)

    nb = batch_block or _pick_batch_block(N, H, W, Cin, Cmid, Cout)
    Lb = nb * H * W
    masks = _tap_masks(H, W, nb)

    full = lambda shape: pl.BlockSpec(shape, lambda n: (0,) * len(shape))
    grid_spec = pltpu.PrefetchScalarGridSpec(
        num_scalar_prefetch=0,
        grid=(N // nb,),
        in_specs=[
            pl.BlockSpec((Cin, Lb), lambda n: (0, n)),           # x
            full((Cmid, Cin)),                                   # w1 (folded)
            full((Cmid, 9)),                                     # depthwise taps (folded)
            full((9, 1, Lb)),                                    # border masks
            full((Cmid, 1)), full((Cmid, 1)),                    # b1, b2
            full((Cout, Cmid + Cin)),                            # [w3 | wsc] (folded)
            full((Cout, 1)),                                     # b3
        ],
        out_specs=pl.BlockSpec((Cout, Lb), lambda n: (0, n)),
    )

    out2d = pl.pallas_call(
        functools.partial(_lip_resblock_kernel, W),
        out_shape=jax.ShapeDtypeStruct((Cout, N * H * W), jnp.float32),
        grid_spec=grid_spec,
        compiler_params=pltpu.CompilerParams(
            dimension_semantics=("parallel",),
            vmem_limit_bytes=32 * 1024 * 1024),
    )(x2d, w1f, wd_s, masks, b1c, b2c, wcat, b3c)

    out = out2d.reshape(Cout, N, H, W)
    if stride != 1:
        # TODO(synk): stride>1 currently computes the full-resolution conv3/shortcut in
        # the kernel and subsamples here; a strided index_map could skip that work.
        out = out[:, :, ::stride, ::stride]
    return jnp.transpose(out, (1, 2, 3, 0))                      # NHWC


# ------------------------- parameter construction --------------------------

def _fold_bn(gamma, beta, mean, var, eps=1e-5):
    s = gamma / jnp.sqrt(var + eps)
    return s, beta - mean * s


def make_params(key, in_planes, out_planes, stride=1):
    mid = out_planes  # expansion == 1
    ks = jax.random.split(key, 8)
    w1 = 0.1 * jax.random.normal(ks[0], (in_planes, mid), jnp.float32)
    wd = 0.1 * jax.random.normal(ks[1], (3, 3, mid), jnp.float32)
    w3 = 0.1 * jax.random.normal(ks[2], (mid, out_planes), jnp.float32)
    if stride != 1 or in_planes != out_planes:
        wsc = 0.1 * jax.random.normal(ks[3], (in_planes, out_planes), jnp.float32)
    else:
        wsc = jnp.eye(in_planes, dtype=jnp.float32)              # exact identity shortcut

    def bn(k, c):
        g = jax.random.uniform(k, (c,), jnp.float32, 0.5, 1.5)
        b = 0.1 * jax.random.normal(jax.random.fold_in(k, 1), (c,), jnp.float32)
        m = 0.1 * jax.random.normal(jax.random.fold_in(k, 2), (c,), jnp.float32)
        v = jax.random.uniform(jax.random.fold_in(k, 3), (c,), jnp.float32, 0.5, 1.5)
        return _fold_bn(g, b, m, v)

    s1, b1 = bn(ks[4], mid)
    s2, b2 = bn(ks[5], mid)
    s3, b3 = bn(ks[6], out_planes)
    return (w1, wd, w3, wsc, s1, b1, s2, b2, s3, b3)


# ------------------------- pure-JAX reference (NHWC) -----------------------

def lip_resblock_ref(x, params, *, stride=1):
    w1, wd, w3, wsc, s1, b1, s2, b2, s3, b3 = params
    N, H, W, _ = x.shape
    y1 = jnp.maximum(jnp.einsum('nhwi,io->nhwo', x, w1) * s1 + b1, 0.0)
    y1p = jnp.pad(y1, ((0, 0), (1, 1), (1, 1), (0, 0)))
    acc = jnp.zeros_like(y1)
    for dy in range(3):
        for dx in range(3):
            acc = acc + y1p[:, dy:dy + H, dx:dx + W, :] * wd[dy, dx]
    y2 = acc * s2 + b2
    y2s = y2[:, ::stride, ::stride, :]
    xs = x[:, ::stride, ::stride, :]
    y3 = jnp.einsum('nhwi,io->nhwo', y2s, w3) * s3 + b3
    sc = jnp.einsum('nhwi,io->nhwo', xs, wsc)
    return jnp.maximum(y3 + sc, 0.0)


if __name__ == "__main__":
    key = jax.random.PRNGKey(0)
    k1, k2, k3, k4 = jax.random.split(key, 4)

    # case 1: stride=1, Cin != Cout (shortcut is a 1x1 conv)
    x = jax.random.normal(k1, (2, 16, 16, 8), jnp.float32)       # NHWC
    params = make_params(k2, 8, 16, stride=1)
    out = jax.block_until_ready(lip_resblock(x, params, stride=1))
    ref = lip_resblock_ref(x, params, stride=1)
    assert out.shape == ref.shape
    assert jnp.allclose(out, ref, atol=1e-4, rtol=1e-4), \
        f"stride=1 max err = {jnp.max(jnp.abs(out - ref))}"

    # case 2: stride=2 (strided conv3 + strided 1x1-conv shortcut)
    x2 = jax.random.normal(k3, (2, 16, 16, 16), jnp.float32)     # NHWC
    params2 = make_params(k4, 16, 16, stride=2)
    out2 = jax.block_until_ready(lip_resblock(x2, params2, stride=2))
    ref2 = lip_resblock_ref(x2, params2, stride=2)
    assert out2.shape == ref2.shape
    assert jnp.allclose(out2, ref2, atol=1e-4, rtol=1e-4), \
        f"stride=2 max err = {jnp.max(jnp.abs(out2 - ref2))}"

    print("KERNEL_OK")
</pallas_src>

<mosaic_0001>
module attributes {stable_mosaic.version = 11 : i64} {
  func.func @_lip_resblock_kernel(%arg0: i32, %arg1: memref<8x256xf32, #tpu.memory_space<vmem>>, %arg2: memref<16x8xf32, #tpu.memory_space<vmem>>, %arg3: memref<16x9xf32, #tpu.memory_space<vmem>>, %arg4: memref<9x1x256xf32, #tpu.memory_space<vmem>>, %arg5: memref<16x1xf32, #tpu.memory_space<vmem>>, %arg6: memref<16x1xf32, #tpu.memory_space<vmem>>, %arg7: memref<16x24xf32, #tpu.memory_space<vmem>>, %arg8: memref<16x1xf32, #tpu.memory_space<vmem>>, %arg9: memref<16x256xf32, #tpu.memory_space<vmem>>) attributes {dimension_semantics = [#tpu.dimension_semantics<parallel>], iteration_bounds = array<i64: 2>, scalar_prefetch = 0 : i64, scratch_operands = 0 : i64, tpu.core_type = #tpu.core_type<tc>, window_params = [{transform_indices = @transform_0, window_bounds = array<i64: 8, 256>}, {pipeline_mode = #tpu.pipeline_mode<synchronous>, transform_indices = @transform_1, window_bounds = array<i64: 16, 8>}, {pipeline_mode = #tpu.pipeline_mode<synchronous>, transform_indices = @transform_2, window_bounds = array<i64: 16, 9>}, {pipeline_mode = #tpu.pipeline_mode<synchronous>, transform_indices = @transform_3, window_bounds = array<i64: 9, 1, 256>}, {pipeline_mode = #tpu.pipeline_mode<synchronous>, transform_indices = @transform_4, window_bounds = array<i64: 16, 1>}, {pipeline_mode = #tpu.pipeline_mode<synchronous>, transform_indices = @transform_5, window_bounds = array<i64: 16, 1>}, {pipeline_mode = #tpu.pipeline_mode<synchronous>, transform_indices = @transform_6, window_bounds = array<i64: 16, 24>}, {pipeline_mode = #tpu.pipeline_mode<synchronous>, transform_indices = @transform_7, window_bounds = array<i64: 16, 1>}, {transform_indices = @transform_8, window_bounds = array<i64: 16, 256>}]} {
    %c0 = arith.constant 0 : index
    %c0_0 = arith.constant 0 : index
    %0 = vector.load %arg1[%c0, %c0_0] : memref<8x256xf32, #tpu.memory_space<vmem>>, vector<8x256xf32>
    %c0_1 = arith.constant 0 : index
    %c0_2 = arith.constant 0 : index
    %1 = vector.load %arg2[%c0_1, %c0_2] : memref<16x8xf32, #tpu.memory_space<vmem>>, vector<16x8xf32>
    %cst = arith.constant dense<0.000000e+00> : vector<16x256xf32>
    %2 = tpu.matmul %1, %0, %cst {dimension_numbers = #tpu.dot_dimension_numbers<[1], [0], [0], [1], [0, 0, 1, 1], [], []>} : vector<16x8xf32>, vector<8x256xf32>, vector<16x256xf32> -> vector<16x256xf32>
    %c0_3 = arith.constant 0 : index
    %c0_4 = arith.constant 0 : index
    %3 = vector.load %arg5[%c0_3, %c0_4] : memref<16x1xf32, #tpu.memory_space<vmem>>, vector<16x1xf32>
    %4 = vector.broadcast %3 : vector<16x1xf32> to vector<16x256xf32>
    %5 = arith.addf %2, %4 : vector<16x256xf32>
    %cst_5 = arith.constant 0.000000e+00 : f32
    %6 = vector.broadcast %cst_5 : f32 to vector<16x256xf32>
    %7 = arith.maximumf %5, %6 : vector<16x256xf32>
    %c0_6 = arith.constant 0 : index
    %c0_7 = arith.constant 0 : index
    %8 = vector.load %arg3[%c0_6, %c0_7] : memref<16x9xf32, #tpu.memory_space<vmem>>, vector<16x9xf32>
    %9 = vector.extract_strided_slice %8 {offsets = [0, 4], sizes = [16, 1], strides = [1, 1]} : vector<16x9xf32> to vector<16x1xf32>
    %10 = vector.broadcast %9 : vector<16x1xf32> to vector<16x256xf32>
    %11 = arith.mulf %7, %10 : vector<16x256xf32>
    %c17_i32 = arith.constant 17 : i32
    %12 = tpu.dynamic_rotate %7 by %c17_i32 dim 1 : vector<16x256xf32>, i32 -> vector<16x256xf32>
    %c0_8 = arith.constant 0 : index
    %c0_9 = arith.constant 0 : index
    %c0_10 = arith.constant 0 : index
    %13 = vector.load %arg4[%c0_8, %c0_9, %c0_10] : memref<9x1x256xf32, #tpu.memory_space<vmem>>, vector<1x1x256xf32>
    %14 = vector.shape_cast %13 : vector<1x1x256xf32> to vector<1x256xf32>
    %15 = vector.broadcast %14 : vector<1x256xf32> to vector<16x256xf32>
    %16 = arith.mulf %12, %15 : vector<16x256xf32>
    %17 = vector.extract_strided_slice %8 {offsets = [0, 0], sizes = [16, 1], strides = [1, 1]} : vector<16x9xf32> to vector<16x1xf32>
    %18 = vector.broadcast %17 : vector<16x1xf32> to vector<16x256xf32>
    %19 = arith.mulf %16, %18 : vector<16x256xf32>
    %20 = arith.addf %11, %19 : vector<16x256xf32>
    %c16_i32 = arith.constant 16 : i32
    %21 = tpu.dynamic_rotate %7 by %c16_i32 dim 1 : vector<16x256xf32>, i32 -> vector<16x256xf32>
    %c1 = arith.constant 1 : index
    %c0_11 = arith.constant 0 : index
    %c0_12 = arith.constant 0 : index
    %22 = vector.load %arg4[%c1, %c0_11, %c0_12] : memref<9x1x256xf32, #tpu.memory_space<vmem>>, vector<1x1x256xf32>
    %23 = vector.shape_cast %22 : vector<1x1x256xf32> to vector<1x256xf32>
    %24 = vector.broadcast %23 : vector<1x256xf32> to vector<16x256xf32>
    %25 = arith.mulf %21, %24 : vector<16x256xf32>
    %26 = vector.extract_strided_slice %8 {offsets = [0, 1], sizes = [16, 1], strides = [1, 1]} : vector<16x9xf32> to vector<16x1xf32>
    %27 = vector.broadcast %26 : vector<16x1xf32> to vector<16x256xf32>
    %28 = arith.mulf %25, %27 : vector<16x256xf32>
    %29 = arith.addf %20, %28 : vector<16x256xf32>
    %c15_i32 = arith.constant 15 : i32
    %30 = tpu.dynamic_rotate %7 by %c15_i32 dim 1 : vector<16x256xf32>, i32 -> vector<16x256xf32>
    %c2 = arith.constant 2 : index
    %c0_13 = arith.constant 0 : index
    %c0_14 = arith.constant 0 : index
    %31 = vector.load %arg4[%c2, %c0_13, %c0_14] : memref<9x1x256xf32, #tpu.memory_space<vmem>>, vector<1x1x256xf32>
    %32 = vector.shape_cast %31 : vector<1x1x256xf32> to vector<1x256xf32>
    %33 = vector.broadcast %32 : vector<1x256xf32> to vector<16x256xf32>
    %34 = arith.mulf %30, %33 : vector<16x256xf32>
    %35 = vector.extract_strided_slice %8 {offsets = [0, 2], sizes = [16, 1], strides = [1, 1]} : vector<16x9xf32> to vector<16x1xf32>
    %36 = vector.broadcast %35 : vector<16x1xf32> to vector<16x256xf32>
    %37 = arith.mulf %34, %36 : vector<16x256xf32>
    %38 = arith.addf %29, %37 : vector<16x256xf32>
    %c1_i32 = arith.constant 1 : i32
    %39 = tpu.dynamic_rotate %7 by %c1_i32 dim 1 : vector<16x256xf32>, i32 -> vector<16x256xf32>
    %c3 = arith.constant 3 : index
    %c0_15 = arith.constant 0 : index
    %c0_16 = arith.constant 0 : index
    %40 = vector.load %arg4[%c3, %c0_15, %c0_16] : memref<9x1x256xf32, #tpu.memory_space<vmem>>, vector<1x1x256xf32>
    %41 = vector.shape_cast %40 : vector<1x1x256xf32> to vector<1x256xf32>
    %42 = vector.broadcast %41 : vector<1x256xf32> to vector<16x256xf32>
    %43 = arith.mulf %39, %42 : vector<16x256xf32>
    %44 = vector.extract_strided_slice %8 {offsets = [0, 3], sizes = [16, 1], strides = [1, 1]} : vector<16x9xf32> to vector<16x1xf32>
    %45 = vector.broadcast %44 : vector<16x1xf32> to vector<16x256xf32>
    %46 = arith.mulf %43, %45 : vector<16x256xf32>
    %47 = arith.addf %38, %46 : vector<16x256xf32>
    %c255_i32 = arith.constant 255 : i32
    %48 = tpu.dynamic_rotate %7 by %c255_i32 dim 1 : vector<16x256xf32>, i32 -> vector<16x256xf32>
    %c5 = arith.constant 5 : index
    %c0_17 = arith.constant 0 : index
    %c0_18 = arith.constant 0 : index
    %49 = vector.load %arg4[%c5, %c0_17, %c0_18] : memref<9x1x256xf32, #tpu.memory_space<vmem>>, vector<1x1x256xf32>
    %50 = vector.shape_cast %49 : vector<1x1x256xf32> to vector<1x256xf32>
    %51 = vector.broadcast %50 : vector<1x256xf32> to vector<16x256xf32>
    %52 = arith.mulf %48, %51 : vector<16x256xf32>
    %53 = vector.extract_strided_slice %8 {offsets = [0, 5], sizes = [16, 1], strides = [1, 1]} : vector<16x9xf32> to vector<16x1xf32>
    %54 = vector.broadcast %53 : vector<16x1xf32> to vector<16x256xf32>
    %55 = arith.mulf %52, %54 : vector<16x256xf32>
    %56 = arith.addf %47, %55 : vector<16x256xf32>
    %c241_i32 = arith.constant 241 : i32
    %57 = tpu.dynamic_rotate %7 by %c241_i32 dim 1 : vector<16x256xf32>, i32 -> vector<16x256xf32>
    %c6 = arith.constant 6 : index
    %c0_19 = arith.constant 0 : index
    %c0_20 = arith.constant 0 : index
    %58 = vector.load %arg4[%c6, %c0_19, %c0_20] : memref<9x1x256xf32, #tpu.memory_space<vmem>>, vector<1x1x256xf32>
    %59 = vector.shape_cast %58 : vector<1x1x256xf32> to vector<1x256xf32>
    %60 = vector.broadcast %59 : vector<1x256xf32> to vector<16x256xf32>
    %61 = arith.mulf %57, %60 : vector<16x256xf32>
    %62 = vector.extract_strided_slice %8 {offsets = [0, 6], sizes = [16, 1], strides = [1, 1]} : vector<16x9xf32> to vector<16x1xf32>
    %63 = vector.broadcast %62 : vector<16x1xf32> to vector<16x256xf32>
    %64 = arith.mulf %61, %63 : vector<16x256xf32>
    %65 = arith.addf %56, %64 : vector<16x256xf32>
    %c240_i32 = arith.constant 240 : i32
    %66 = tpu.dynamic_rotate %7 by %c240_i32 dim 1 : vector<16x256xf32>, i32 -> vector<16x256xf32>
    %c7 = arith.constant 7 : index
    %c0_21 = arith.constant 0 : index
    %c0_22 = arith.constant 0 : index
    %67 = vector.load %arg4[%c7, %c0_21, %c0_22] : memref<9x1x256xf32, #tpu.memory_space<vmem>>, vector<1x1x256xf32>
    %68 = vector.shape_cast %67 : vector<1x1x256xf32> to vector<1x256xf32>
    %69 = vector.broadcast %68 : vector<1x256xf32> to vector<16x256xf32>
    %70 = arith.mulf %66, %69 : vector<16x256xf32>
    %71 = vector.extract_strided_slice %8 {offsets = [0, 7], sizes = [16, 1], strides = [1, 1]} : vector<16x9xf32> to vector<16x1xf32>
    %72 = vector.broadcast %71 : vector<16x1xf32> to vector<16x256xf32>
    %73 = arith.mulf %70, %72 : vector<16x256xf32>
    %74 = arith.addf %65, %73 : vector<16x256xf32>
    %c239_i32 = arith.constant 239 : i32
    %75 = tpu.dynamic_rotate %7 by %c239_i32 dim 1 : vector<16x256xf32>, i32 -> vector<16x256xf32>
    %c8 = arith.constant 8 : index
    %c0_23 = arith.constant 0 : index
    %c0_24 = arith.constant 0 : index
    %76 = vector.load %arg4[%c8, %c0_23, %c0_24] : memref<9x1x256xf32, #tpu.memory_space<vmem>>, vector<1x1x256xf32>
    %77 = vector.shape_cast %76 : vector<1x1x256xf32> to vector<1x256xf32>
    %78 = vector.broadcast %77 : vector<1x256xf32> to vector<16x256xf32>
    %79 = arith.mulf %75, %78 : vector<16x256xf32>
    %80 = vector.extract_strided_slice %8 {offsets = [0, 8], sizes = [16, 1], strides = [1, 1]} : vector<16x9xf32> to vector<16x1xf32>
    %81 = vector.broadcast %80 : vector<16x1xf32> to vector<16x256xf32>
    %82 = arith.mulf %79, %81 : vector<16x256xf32>
    %83 = arith.addf %74, %82 : vector<16x256xf32>
    %c0_25 = arith.constant 0 : index
    %c0_26 = arith.constant 0 : index
    %84 = vector.load %arg6[%c0_25, %c0_26] : memref<16x1xf32, #tpu.memory_space<vmem>>, vector<16x1xf32>
    %85 = vector.broadcast %84 : vector<16x1xf32> to vector<16x256xf32>
    %86 = arith.addf %83, %85 : vector<16x256xf32>
    %87 = tpu.concatenate %86, %0 in 0 : vector<16x256xf32>, vector<8x256xf32> -> vector<24x256xf32>
    %c0_27 = arith.constant 0 : index
    %c0_28 = arith.constant 0 : index
    %88 = vector.load %arg7[%c0_27, %c0_28] : memref<16x24xf32, #tpu.memory_space<vmem>>, vector<16x24xf32>
    %cst_29 = arith.constant dense<0.000000e+00> : vector<16x256xf32>
    %89 = tpu.matmul %88, %87, %cst_29 {dimension_numbers = #tpu.dot_dimension_numbers<[1], [0], [0], [1], [0, 0, 1, 1], [], []>} : vector<16x24xf32>, vector<24x256xf32>, vector<16x256xf32> -> vector<16x256xf32>
    %c0_30 = arith.constant 0 : index
    %c0_31 = arith.constant 0 : index
    %90 = vector.load %arg8[%c0_30, %c0_31] : memref<16x1xf32, #tpu.memory_space<vmem>>, vector<16x1xf32>
    %91 = vector.broadcast %90 : vector<16x1xf32> to vector<16x256xf32>
    %92 = arith.addf %89, %91 : vector<16x256xf32>
    %cst_32 = arith.constant 0.000000e+00 : f32
    %93 = vector.broadcast %cst_32 : f32 to vector<16x256xf32>
    %94 = arith.maximumf %92, %93 : vector<16x256xf32>
    %c0_33 = arith.constant 0 : index
    %c0_34 = arith.constant 0 : index
    %95 = vector.load %arg9[%c0_33, %c0_34] : memref<16x256xf32, #tpu.memory_space<vmem>>, vector<16x256xf32>
    tpu.vector_store %arg9[%c0_33, %c0_34], %94 {strides = array<i32>} : memref<16x256xf32, #tpu.memory_space<vmem>>, vector<16x256xf32>,
    return
  }
  func.func @transform_0(%arg0: i32) -> (i32, i32) {
    %c0_i32 = arith.constant 0 : i32
    %c0_i32_0 = arith.constant 0 : i32
    return %c0_i32, %arg0 : i32, i32
  }
  func.func @transform_1(%arg0: i32) -> (i32, i32) {
    %c0_i32 = arith.constant 0 : i32
    %c0_i32_0 = arith.constant 0 : i32
    %c0_i32_1 = arith.constant 0 : i32
    return %c0_i32, %c0_i32_0 : i32, i32
  }
  func.func @transform_2(%arg0: i32) -> (i32, i32) {
    %c0_i32 = arith.constant 0 : i32
    %c0_i32_0 = arith.constant 0 : i32
    %c0_i32_1 = arith.constant 0 : i32
    return %c0_i32, %c0_i32_0 : i32, i32
  }
  func.func @transform_3(%arg0: i32) -> (i32, i32, i32) {
    %c0_i32 = arith.constant 0 : i32
    %c0_i32_0 = arith.constant 0 : i32
    %c0_i32_1 = arith.constant 0 : i32
    %c0_i32_2 = arith.constant 0 : i32
    return %c0_i32, %c0_i32_0, %c0_i32_1 : i32, i32, i32
  }
  func.func @transform_4(%arg0: i32) -> (i32, i32) {
    %c0_i32 = arith.constant 0 : i32
    %c0_i32_0 = arith.constant 0 : i32
    %c0_i32_1 = arith.constant 0 : i32
    return %c0_i32, %c0_i32_0 : i32, i32
  }
  func.func @transform_5(%arg0: i32) -> (i32, i32) {
    %c0_i32 = arith.constant 0 : i32
    %c0_i32_0 = arith.constant 0 : i32
    %c0_i32_1 = arith.constant 0 : i32
    return %c0_i32, %c0_i32_0 : i32, i32
  }
  func.func @transform_6(%arg0: i32) -> (i32, i32) {
    %c0_i32 = arith.constant 0 : i32
    %c0_i32_0 = arith.constant 0 : i32
    %c0_i32_1 = arith.constant 0 : i32
    return %c0_i32, %c0_i32_0 : i32, i32
  }
  func.func @transform_7(%arg0: i32) -> (i32, i32) {
    %c0_i32 = arith.constant 0 : i32
    %c0_i32_0 = arith.constant 0 : i32
    %c0_i32_1 = arith.constant 0 : i32
    return %c0_i32, %c0_i32_0 : i32, i32
  }
  func.func @transform_8(%arg0: i32) -> (i32, i32) {
    %c0_i32 = arith.constant 0 : i32
    %c0_i32_0 = arith.constant 0 : i32
    return %c0_i32, %arg0 : i32, i32
  }
}

</mosaic_0001>

<llo_original>
// kernel: tpu_custom_call.1
$region0: #{tpu_custom_call.1}
  #allocation0 [shape = 'u32[]', space=smem, size = 0x4, offset = 0x4, fixed_abs, tag = 'smem constant byte address 0x4 - core index']
  #allocation1 [shape = 'u32[144,128]{1,0:T(1,128)}', space=vmem, size = 0x12000, scoped, tag = 'internal scratch']
  %s0 = inlined_call_operand.vmem [shape: f32[8,512], index: 0, kind: input, shape index: {}]
  %s1 = inlined_call_operand.vmem [shape: f32[16,8], index: 1, kind: input, shape index: {}]
  %s2 = inlined_call_operand.vmem [shape: f32[16,9], index: 2, kind: input, shape index: {}]
  %s3 = inlined_call_operand.vmem [shape: f32[9,1,256], index: 3, kind: input, shape index: {}]
  %s4 = inlined_call_operand.vmem [shape: f32[16,1], index: 4, kind: input, shape index: {}]
  %s5 = inlined_call_operand.vmem [shape: f32[16,1], index: 5, kind: input, shape index: {}]
  %s6 = inlined_call_operand.vmem [shape: f32[16,24], index: 6, kind: input, shape index: {}]
  %s7 = inlined_call_operand.vmem [shape: f32[16,1], index: 7, kind: input, shape index: {}]
  %s8 = inlined_call_operand.hbm [shape: f32[16,512], index: 8, kind: output, shape index: {}]
  %s9 = sld [smem:[#allocation0]]
  $region65: #{tpu_custom_call.1} parent=0
    _
  %s11 = ssub.s32 1, %s9
  %s12 = scalar_select 0, %s11, %s9
  $region1: #{tpu_custom_call.1} parent=0
    #allocation2 [shape = 'u8[32768]{0}', space=vmem, size = 0x8000, scoped, tag = 'output window, operand 0']
    #allocation3 [shape = 's32[2]{0}', space=sflag, size = 0x8, scoped, tag = 'scoped memory for tpu_custom_call.1']
    %13 = vsyncpa [#allocation3], 0
    %s14 = scalar_lea.sflag [#allocation3], 1
    %15 = vsyncpa %s14, 0
    loop: start=0, step=1, limit=4
    $region2: #{tpu_custom_call.1} parent=1 // loop_pre_header
      _
    $region3: #{tpu_custom_call.1} parent=1 // loop_header
      %s17 = sphi 0, %s21
      %p18 = scmp.ge.s32.totalorder %s17, 4
      %s27 = sphi 0, %s29
      %s30 = sphi 0, %s27
      %s31 = sphi 0, %s30
      %s47 = sphi 0, %s31
      %s51 = sphi 0, %s51
      %s53 = sphi 0, %s51
      %s54 = sphi 0, %s53
      %s68 = sphi 0, %s54
      %s72 = sphi 0, %s72
      %s74 = sphi 0, %s72
      %s75 = sphi 0, %s74
      %s89 = sphi 0, %s75
      %s93 = sphi 0, %s93
      %s95 = sphi 0, %s93
      %s96 = sphi 0, %s95
      %s110 = sphi 0, %s96
      %s114 = sphi 0, %s114
      %s116 = sphi 0, %s114
      %s117 = sphi 0, %s116
      %s131 = sphi 0, %s117
      %s135 = sphi 0, %s135
      %s137 = sphi 0, %s135
      %s138 = sphi 0, %s137
      %s152 = sphi 0, %s138
      %s156 = sphi 0, %s156
      %s158 = sphi 0, %s156
      %s159 = sphi 0, %s158
      %s173 = sphi 0, %s159
      %s177 = sphi 0, %s177
      %s179 = sphi 0, %s177
      %s180 = sphi 0, %s179
      %s194 = sphi 0, %s180
      %s200 = sphi 0, %s202
      %s203 = sphi 0, %s200
      %s204 = sphi 0, %s203
      %s220 = sphi 0, %s204
    $region4: #{tpu_custom_call.1} parent=1 // loop_header_branch
      %20 = sbr.rel (%p18) target = $region8
    $region5: #{tpu_custom_call.1} parent=1 // loop_body
      %s22 = ssub.s32 %s17, 1
      %s23 = ssub.s32 %s17, 2
      %s24 = sadd.s32 %s17, 1
      %s25 = ssub.s32 %s17, %s24
      %p26 = scmp.eq.s32.totalorder %s25, 0
      %s28 = sadd.s32 %s27, 1
      %s29 = scalar_select %p26, %s27, %s28
      %p32 = pneg %p26
      %p33 = scmp.eq.s32.totalorder %s17, 1
      %p34 = por %p32, %p33
      %p35 = scmp.ne.s32.totalorder %s27, %s30
      %p36 = scmp.eq.s32.totalorder %s17, 0
      %p37 = por %p35, %p36
      %p38 = scmp.ne.s32.totalorder %s27, %s30
      %p39 = scmp.eq.s32.totalorder %s22, 1
      %p40 = por %p38, %p39
      %p41 = scmp.ne.s32.totalorder %s30, %s31
      %p42 = scmp.eq.s32.totalorder %s22, 0
      %p43 = por %p41, %p42
      %p44 = scmp.ne.s32.totalorder %s30, %s31
      %p45 = scmp.eq.s32.totalorder %s23, 1
      %p46 = por %p44, %p45
      %p48 = scmp.ne.s32.totalorder %s31, %s47
      %p49 = scmp.eq.s32.totalorder %s23, 0
      %p50 = por %p48, %p49
      %s52 = sadd.s32 %s51, 1
      %p55 = scmp.eq.s32.totalorder %s17, 1
      %p56 = scmp.ne.s32.totalorder %s51, %s53
      %p57 = scmp.eq.s32.totalorder %s17, 0
      %p58 = por %p56, %p57
      %p59 = scmp.ne.s32.totalorder %s51, %s53
      %p60 = scmp.eq.s32.totalorder %s22, 1
      %p61 = por %p59, %p60
      %p62 = scmp.ne.s32.totalorder %s53, %s54
      %p63 = scmp.eq.s32.totalorder %s22, 0
      %p64 = por %p62, %p63
      %p65 = scmp.ne.s32.totalorder %s53, %s54
      %p66 = scmp.eq.s32.totalorder %s23, 1
      %p67 = por %p65, %p66
      %p69 = scmp.ne.s32.totalorder %s54, %s68
      %p70 = scmp.eq.s32.totalorder %s23, 0
      %p71 = por %p69, %p70
      %s73 = sadd.s32 %s72, 1
      %p76 = scmp.eq.s32.totalorder %s17, 1
      %p77 = scmp.ne.s32.totalorder %s72, %s74
      %p78 = scmp.eq.s32.totalorder %s17, 0
      %p79 = por %p77, %p78
      %p80 = scmp.ne.s32.totalorder %s72, %s74
      %p81 = scmp.eq.s32.totalorder %s22, 1
      %p82 = por %p80, %p81
      %p83 = scmp.ne.s32.totalorder %s74, %s75
      %p84 = scmp.eq.s32.totalorder %s22, 0
      %p85 = por %p83, %p84
      %p86 = scmp.ne.s32.totalorder %s74, %s75
      %p87 = scmp.eq.s32.totalorder %s23, 1
      %p88 = por %p86, %p87
      %p90 = scmp.ne.s32.totalorder %s75, %s89
      %p91 = scmp.eq.s32.totalorder %s23, 0
      %p92 = por %p90, %p91
      %s94 = sadd.s32 %s93, 1
      %p97 = scmp.eq.s32.totalorder %s17, 1
      %p98 = scmp.ne.s32.totalorder %s93, %s95
      %p99 = scmp.eq.s32.totalorder %s17, 0
      %p100 = por %p98, %p99
      %p101 = scmp.ne.s32.totalorder %s93, %s95
      %p102 = scmp.eq.s32.totalorder %s22, 1
      %p103 = por %p101, %p102
      %p104 = scmp.ne.s32.totalorder %s95, %s96
      %p105 = scmp.eq.s32.totalorder %s22, 0
      %p106 = por %p104, %p105
      %p107 = scmp.ne.s32.totalorder %s95, %s96
      %p108 = scmp.eq.s32.totalorder %s23, 1
      %p109 = por %p107, %p108
      %p111 = scmp.ne.s32.totalorder %s96, %s110
      %p112 = scmp.eq.s32.totalorder %s23, 0
      %p113 = por %p111, %p112
      %s115 = sadd.s32 %s114, 1
      %p118 = scmp.eq.s32.totalorder %s17, 1
      %p119 = scmp.ne.s32.totalorder %s114, %s116
      %p120 = scmp.eq.s32.totalorder %s17, 0
      %p121 = por %p119, %p120
      %p122 = scmp.ne.s32.totalorder %s114, %s116
      %p123 = scmp.eq.s32.totalorder %s22, 1
      %p124 = por %p122, %p123
      %p125 = scmp.ne.s32.totalorder %s116, %s117
      %p126 = scmp.eq.s32.totalorder %s22, 0
      %p127 = por %p125, %p126
      %p128 = scmp.ne.s32.totalorder %s116, %s117
      %p129 = scmp.eq.s32.totalorder %s23, 1
      %p130 = por %p128, %p129
      %p132 = scmp.ne.s32.totalorder %s117, %s131
      %p133 = scmp.eq.s32.totalorder %s23, 0
      %p134 = por %p132, %p133
      %s136 = sadd.s32 %s135, 1
      %p139 = scmp.eq.s32.totalorder %s17, 1
      %p140 = scmp.ne.s32.totalorder %s135, %s137
      %p141 = scmp.eq.s32.totalorder %s17, 0
      %p142 = por %p140, %p141
      %p143 = scmp.ne.s32.totalorder %s135, %s137
      %p144 = scmp.eq.s32.totalorder %s22, 1
      %p145 = por %p143, %p144
      %p146 = scmp.ne.s32.totalorder %s137, %s138
      %p147 = scmp.eq.s32.totalorder %s22, 0
      %p148 = por %p146, %p147
      %p149 = scmp.ne.s32.totalorder %s137, %s138
      %p150 = scmp.eq.s32.totalorder %s23, 1
      %p151 = por %p149, %p150
      %p153 = scmp.ne.s32.totalorder %s138, %s152
      %p154 = scmp.eq.s32.totalorder %s23, 0
      %p155 = por %p153, %p154
      %s157 = sadd.s32 %s156, 1
      %p160 = scmp.eq.s32.totalorder %s17, 1
      %p161 = scmp.ne.s32.totalorder %s156, %s158
      %p162 = scmp.eq.s32.totalorder %s17, 0
      %p163 = por %p161, %p162
      %p164 = scmp.ne.s32.totalorder %s156, %s158
      %p165 = scmp.eq.s32.totalorder %s22, 1
      %p166 = por %p164, %p165
      %p167 = scmp.ne.s32.totalorder %s158, %s159
      %p168 = scmp.eq.s32.totalorder %s22, 0
      %p169 = por %p167, %p168
      %p170 = scmp.ne.s32.totalorder %s158, %s159
      %p171 = scmp.eq.s32.totalorder %s23, 1
      %p172 = por %p170, %p171
      %p174 = scmp.ne.s32.totalorder %s159, %s173
      %p175 = scmp.eq.s32.totalorder %s23, 0
      %p176 = por %p174, %p175
      %s178 = sadd.s32 %s177, 1
      %p181 = scmp.eq.s32.totalorder %s17, 1
      %p182 = scmp.ne.s32.totalorder %s177, %s179
      %p183 = scmp.eq.s32.totalorder %s17, 0
      %p184 = por %p182, %p183
      %p185 = scmp.ne.s32.totalorder %s177, %s179
      %p186 = scmp.eq.s32.totalorder %s22, 1
      %p187 = por %p185, %p186
      %p188 = scmp.ne.s32.totalorder %s179, %s180
      %p189 = scmp.eq.s32.totalorder %s22, 0
      %p190 = por %p188, %p189
      %p191 = scmp.ne.s32.totalorder %s179, %s180
      %p192 = scmp.eq.s32.totalorder %s23, 1
      %p193 = por %p191, %p192
      %p195 = scmp.ne.s32.totalorder %s180, %s194
      %p196 = scmp.eq.s32.totalorder %s23, 0
      %p197 = por %p195, %p196
      %s198 = ssub.s32 %s17, %s24
      %p199 = scmp.eq.s32.totalorder %s198, 0
      %s201 = sadd.s32 %s200, 1
      %s202 = scalar_select %p199, %s200, %s201
      %p205 = pneg %p199
      %p206 = scmp.eq.s32.totalorder %s17, 1
      %p207 = por %p205, %p206
      %p208 = scmp.ne.s32.totalorder %s200, %s203
      %p209 = scmp.eq.s32.totalorder %s17, 0
      %p210 = por %p208, %p209
      %p211 = scmp.ne.s32.totalorder %s200, %s203
      %p212 = scmp.eq.s32.totalorder %s22, 1
      %p213 = por %p211, %p212
      %p214 = scmp.ne.s32.totalorder %s203, %s204
      %p215 = scmp.eq.s32.totalorder %s22, 0
      %p216 = por %p214, %p215
      %p217 = scmp.ne.s32.totalorder %s203, %s204
      %p218 = scmp.eq.s32.totalorder %s23, 1
      %p219 = por %p217, %p218
      %p221 = scmp.ne.s32.totalorder %s204, %s220
      %p222 = scmp.eq.s32.totalorder %s23, 0
      %p223 = por %p221, %p222
      %p224 = scmp.le.s32.totalorder 1, %s17
      %p225 = scmp.lt.s32.totalorder %s17, 3
      %p226 = pnand %p224, %p225
      %p227 = pneg %p226
      // Predicated region
      $region9: #{tpu_custom_call.1} parent=5 // pred_check
        _
      $region10: #{tpu_custom_call.1} parent=5 // pred_check_branch
        %229 = sbr.rel (%p226) target = $region12
      $region11: #{tpu_custom_call.1} parent=5 // pred_region
        %s230 = ssub.s32 %s17, 1
        // Predicated region
        $region13: #{tpu_custom_call.1} parent=11 // pred_check
          %p231 = pneg %p64
        $region14: #{tpu_custom_call.1} parent=11 // pred_check_branch
          %233 = sbr.rel (%p231) target = $region16
        $region15: #{tpu_custom_call.1} parent=11 // pred_region
          _
        $region16: #{tpu_custom_call.1} parent=11 // pred_fallthru
          _
        // Predicated region
        $region17: #{tpu_custom_call.1} parent=11 // pred_check
          %p234 = pneg %p85
        $region18: #{tpu_custom_call.1} parent=11 // pred_check_branch
          %236 = sbr.rel (%p234) target = $region20
        $region19: #{tpu_custom_call.1} parent=11 // pred_region
          _
        $region20: #{tpu_custom_call.1} parent=11 // pred_fallthru
          _
        // Predicated region
        $region21: #{tpu_custom_call.1} parent=11 // pred_check
          %p237 = pneg %p106
        $region22: #{tpu_custom_call.1} parent=11 // pred_check_branch
          %239 = sbr.rel (%p237) target = $region24
        $region23: #{tpu_custom_call.1} parent=11 // pred_region
          _
        $region24: #{tpu_custom_call.1} parent=11 // pred_fallthru
          _
        // Predicated region
        $region25: #{tpu_custom_call.1} parent=11 // pred_check
          %p240 = pneg %p127
        $region26: #{tpu_custom_call.1} parent=11 // pred_check_branch
          %242 = sbr.rel (%p240) target = $region28
        $region27: #{tpu_custom_call.1} parent=11 // pred_region
          _
        $region28: #{tpu_custom_call.1} parent=11 // pred_fallthru
          _
        // Predicated region
        $region29: #{tpu_custom_call.1} parent=11 // pred_check
          %p243 = pneg %p148
        $region30: #{tpu_custom_call.1} parent=11 // pred_check_branch
          %245 = sbr.rel (%p243) target = $region32
        $region31: #{tpu_custom_call.1} parent=11 // pred_region
          _
        $region32: #{tpu_custom_call.1} parent=11 // pred_fallthru
          _
        // Predicated region
        $region33: #{tpu_custom_call.1} parent=11 // pred_check
          %p246 = pneg %p169
        $region34: #{tpu_custom_call.1} parent=11 // pred_check_branch
          %248 = sbr.rel (%p246) target = $region36
        $region35: #{tpu_custom_call.1} parent=11 // pred_region
          _
        $region36: #{tpu_custom_call.1} parent=11 // pred_fallthru
          _
        // Predicated region
        $region37: #{tpu_custom_call.1} parent=11 // pred_check
          %p249 = pneg %p190
        $region38: #{tpu_custom_call.1} parent=11 // pred_check_branch
          %251 = sbr.rel (%p249) target = $region40
        $region39: #{tpu_custom_call.1} parent=11 // pred_region
          _
        $region40: #{tpu_custom_call.1} parent=11 // pred_fallthru
          _
      $region12: #{tpu_custom_call.1} parent=5 // pred_fallthru
        _
      %p252 = scmp.lt.s32.totalorder %s17, 2
      // Predicated region
      $region41: #{tpu_custom_call.1} parent=5 // pred_check
        %p253 = pneg %p252
      $region42: #{tpu_custom_call.1} parent=5 // pred_check_branch
        %255 = sbr.rel (%p253) target = $region44
      $region43: #{tpu_custom_call.1} parent=5 // pred_region
        // Predicated region
        $region45: #{tpu_custom_call.1} parent=43 // pred_check
          %p256 = pneg %p37
        $region46: #{tpu_custom_call.1} parent=43 // pred_check_branch
          %258 = sbr.rel (%p256) target = $region48
        $region47: #{tpu_custom_call.1} parent=43 // pred_region
          %s259 = smul.u32 2, %s17
          %p260 = scmp.lt.s32.totalorder %s259, 3
          %s261 = scalar_select %p260, %s259, 3
          %s262 = smul.addr %s261, 8
          %s263 = scalar_lea.vmem %s0, %s262
          %s264 = smul.u32 2, %s17
        $region48: #{tpu_custom_call.1} parent=43 // pred_fallthru
          _
      $region44: #{tpu_custom_call.1} parent=5 // pred_fallthru
        _
      %p265 = scmp.le.s32.totalorder 1, %s17
      %p266 = scmp.lt.s32.totalorder %s17, 3
      %p267 = pnand %p265, %p266
      %p268 = pneg %p267
      // Predicated region
      $region49: #{tpu_custom_call.1} parent=5 // pred_check
        _
      $region50: #{tpu_custom_call.1} parent=5 // pred_check_branch
        %270 = sbr.rel (%p267) target = $region52
      $region51: #{tpu_custom_call.1} parent=5 // pred_region
        %s271 = ssub.s32 %s17, 1
        %s272 = smul.u32 2, %s22
        %p273 = scmp.lt.s32.totalorder %s272, 3
        %s274 = scalar_select %p273, %s272, 3
        %s275 = smul.addr %s274, 8
        %s276 = scalar_lea.vmem %s0, %s275
        %p277 = pneg %p43
        %p278 = pneg %p40
        %p279 = pneg %p64
        %p280 = pneg %p61
        %p281 = pneg %p85
        %p282 = pneg %p82
        %p283 = pneg %p106
        %p284 = pneg %p103
        %p285 = pneg %p127
        %p286 = pneg %p124
        %p287 = pneg %p148
        %p288 = pneg %p145
        %p289 = pneg %p169
        %p290 = pneg %p166
        %p291 = pneg %p190
        %p292 = pneg %p187
        %p293 = pneg %p216
        %p294 = pneg %p213
        %s295 = sand.u32 %s203, 1
        %s296 = scalar_lea.sflag [#allocation3], %s295
        %s297 = sand.u32 %s203, 1
        %s298 = smul.addr %s297, 32
        %s299 = scalar_lea.vmem [#allocation2], %s298
        %s300 = smul.u32 2, %s22
        %p301 = scmp.lt.s32.totalorder %s300, 3
        %s302 = scalar_select %p301, %s300, 3
        %s303 = smul.addr %s302, 8
        %s304 = scalar_lea.vmem %s0, %s303
        %s305 = smul.u32 2, %s22
        %s306 = smul.u32 2, %s22
        %v307 = vld [vmem:[%s304] sm:$0xff]
        %v308 = vld [vmem:[%s304 + $0x8] sm:$0xff]
        %v309 = vld [vmem:[%s1] sm:$0xff]
        %v310 = vld [vmem:[%s1 + $0x8] sm:$0xff]
        %v311 = vld [vmem:[%s4] sm:$0xff]
        %v312 = vld [vmem:[%s4 + $0x8] sm:$0xff]
        %314 = vset.pattern.permute.xlu0 0
        %315 = vperm.xlu0 %314, %v311
        %v316 = vpop.permute.xlu0 %315
        %319 = vset.pattern.permute.xlu0 0
        %320 = vperm.xlu0 %319, %v312
        %v321 = vpop.permute.xlu0 %320
        %vm323 = vcmask 64512
        %v325 = vsel %vm323, %v309, 0
        %v328 = vsel %vm323, %v310, 0
        %330 = vmatprep.subr.mxu0 0.0
        %331 = vmatpush1.msra.mxu0 0.0
        %332 = vmatprep.subr.mxu0 0.0
        %333 = vmatpush1.msra.mxu0 0.0
        %334 = vmatprep.subr.mxu0 0.0
        %335 = vmatpush1.msra.mxu0 0.0
        %336 = vmatprep.subr.mxu0 0.0
        %337 = vmatpush1.msra.mxu0 0.0
        %338 = vmatprep.subr.mxu0 0.0
        %339 = vmatpush1.msra.mxu0 0.0
        %340 = vmatprep.subr.mxu0 0.0
        %341 = vmatpush1.msra.mxu0 0.0
        %342 = vmatprep.subr.mxu0 0.0
        %343 = vmatpush1.msra.mxu0 0.0
        %344 = vmatprep.subr.mxu0 0.0
        %345 = vmatpush1.msra.mxu0 0.0
        %346 = vmatprep.subr.mxu0 0.0
        %347 = vmatpush1.msra.mxu0 0.0
        %348 = vmatprep.subr.mxu0 0.0
        %349 = vmatpush1.msra.mxu0 0.0
        %350 = vmatprep.subr.mxu0 0.0
        %351 = vmatpush1.msra.mxu0 0.0
        %352 = vmatprep.subr.mxu0 0.0
        %353 = vmatpush1.msra.mxu0 0.0
        %354 = vmatprep.subr.mxu0 0.0
        %355 = vmatpush1.msra.mxu0 0.0
        %356 = vmatprep.subr.mxu0 0.0
        %357 = vmatpush1.msra.mxu0 0.0
        %358 = vmatprep.subr.mxu0 0.0
        %359 = vmatpush1.msra.mxu0 0.0
        %360 = vmatprep.subr.mxu0 %v308
        %361 = vmatpush1.msra.mxu0 %v307
        %362 = vmatprep.subr.mxu0 0.0
        %363 = vmatpush2.msra.mxu0 0.0
        %364 = vmatprep.subr.mxu0 0.0
        %365 = vmatpush2.msra.mxu0 0.0
        %366 = vmatprep.subr.mxu0 0.0
        %367 = vmatpush2.msra.mxu0 0.0
        %368 = vmatprep.subr.mxu0 0.0
        %369 = vmatpush2.msra.mxu0 0.0
        %370 = vmatprep.subr.mxu0 0.0
        %371 = vmatpush2.msra.mxu0 0.0
        %372 = vmatprep.subr.mxu0 0.0
        %373 = vmatpush2.msra.mxu0 0.0
        %374 = vmatprep.subr.mxu0 0.0
        %375 = vmatpush2.msra.mxu0 0.0
        %376 = vmatprep.subr.mxu0 0.0
        %377 = vmatpush2.msra.mxu0 0.0
        %378 = vmatprep.subr.mxu0 0.0
        %379 = vmatpush2.msra.mxu0 0.0
        %380 = vmatprep.subr.mxu0 0.0
        %381 = vmatpush2.msra.mxu0 0.0
        %382 = vmatprep.subr.mxu0 0.0
        %383 = vmatpush2.msra.mxu0 0.0
        %384 = vmatprep.subr.mxu0 0.0
        %385 = vmatpush2.msra.mxu0 0.0
        %386 = vmatprep.subr.mxu0 0.0
        %387 = vmatpush2.msra.mxu0 0.0
        %388 = vmatprep.subr.mxu0 0.0
        %389 = vmatpush2.msra.mxu0 0.0
        %390 = vmatprep.subr.mxu0 0.0
        %391 = vmatpush2.msra.mxu0 0.0
        %392 = vmatprep.subr.mxu0 0.0
        %393 = vmatpush2.msra.mxu0 0.0
        %394 = vmatprep.mubr.f32.mxu0 0.0
        %395 = vmatmul.mubr.f32.gmra.mxu0 %v325
        %v396 = vpop.f32.mrf.mxu0
        %v397 = vadd.f32 %v316, %v396
        %v398 = vpop.f32.mrf.mxu0
        %v399 = vadd.f32 %v316, %v398
        %400 = vmatprep.mubr.f32.mxu0 0.0
        %401 = vmatmul.mubr.f32.gmra.mxu0 %v328
        %v402 = vpop.f32.mrf.mxu0
        %v403 = vadd.f32 %v321, %v402
        %v404 = vpop.f32.mrf.mxu0
        %v405 = vadd.f32 %v321, %v404
        %406 = vdwg.mxu0
        %v407 = vmax.f32 %v397, 0.0
        %v408 = vmax.f32 %v399, 0.0
        %v409 = vmax.f32 %v403, 0.0
        %v410 = vmax.f32 %v405, 0.0
        %v411 = vld [vmem:[%s2] sm:$0xff]
        %v412 = vld [vmem:[%s2 + $0x8] sm:$0xff]
        %414 = vset.pattern.permute.xlu0 4
        %415 = vperm.xlu0 %414, %v411
        %v416 = vpop.permute.xlu0 %415
        %419 = vset.pattern.permute.xlu0 4
        %420 = vperm.xlu0 %419, %v412
        %v421 = vpop.permute.xlu0 %420
        %v423 = vmul.f32 %v407, %v416
        %v424 = vmul.f32 %v408, %v416
        %v425 = vmul.f32 %v409, %v421
        %v426 = vmul.f32 %v410, %v421
        %427 = vrot.lane.b32.xlu0 %v407, 17
        %v428 = vpop.permute.xlu0 %427
        %429 = vrot.lane.b32.xlu0 %v409, 17
        %v430 = vpop.permute.xlu0 %429
        %431 = vrot.lane.b32.xlu0 %v408, 17
        %v432 = vpop.permute.xlu0 %431
        %433 = vrot.lane.b32.xlu0 %v410, 17
        %v434 = vpop.permute.xlu0 %433
        %v435 = vlaneseq
        %v436 = vand.u32 %v435, 127
        %vm437 = vcmp.lt.s32.totalorder %v436, 17
        %v438 = vsel %vm437, %v428, %v432
        %v439 = vsel %vm437, %v430, %v434
        %v440 = vsel %vm437, %v432, %v428
        %v441 = vsel %vm437, %v434, %v430
        %v442 = vld [vmem:[%s3] sm:$0x3]
        %v444 = vlaneseq
        %v445 = vshrl.u32 %v444, 7
        %v446 = vsub.s32 0, %v445
        %v447 = vrot.slane %v442, %v446
        %v448 = vlaneseq
        %v449 = vshrl.u32 %v448, 7
        %v450 = vsub.s32 1, %v449
        %v451 = vrot.slane %v442, %v450
        %v454 = vmul.f32 %v440, %v447
        %v455 = vmul.f32 %v438, %v451
        %v456 = vmul.f32 %v441, %v447
        %v457 = vmul.f32 %v439, %v451
        %458 = vset.pattern.permute.xlu0 0
        %459 = vperm.xlu0 %458, %v411
        %v460 = vpop.permute.xlu0 %459
        %462 = vset.pattern.permute.xlu0 0
        %463 = vperm.xlu0 %462, %v412
        %v464 = vpop.permute.xlu0 %463
        %v466 = vmul.f32 %v454, %v460
        %v467 = vmul.f32 %v455, %v460
        %v468 = vmul.f32 %v456, %v464
        %v469 = vmul.f32 %v457, %v464
        %v470 = vadd.f32 %v423, %v466
        %v471 = vadd.f32 %v424, %v467
        %v472 = vadd.f32 %v425, %v468
        %v473 = vadd.f32 %v426, %v469
        %474 = vrot.lane.b32.xlu0 %v407, 16
        %v475 = vpop.permute.xlu0 %474
        %476 = vrot.lane.b32.xlu0 %v409, 16
        %v477 = vpop.permute.xlu0 %476
        %478 = vrot.lane.b32.xlu0 %v408, 16
        %v479 = vpop.permute.xlu0 %478
        %480 = vrot.lane.b32.xlu0 %v410, 16
        %v481 = vpop.permute.xlu0 %480
        %vm482 = vcmp.lt.s32.totalorder %v436, 16
        %v483 = vsel %vm482, %v475, %v479
        %v484 = vsel %vm482, %v477, %v481
        %v485 = vsel %vm482, %v479, %v475
        %v486 = vsel %vm482, %v481, %v477
        %s487 = scalar_lea.vmem %s3, 2
        %v488 = vld [vmem:[%s487] sm:$0x3]
        %v490 = vlaneseq
        %v491 = vshrl.u32 %v490, 7
        %v492 = vsub.s32 0, %v491
        %v493 = vrot.slane %v488, %v492
        %v494 = vlaneseq
        %v495 = vshrl.u32 %v494, 7
        %v496 = vsub.s32 1, %v495
        %v497 = vrot.slane %v488, %v496
        %v500 = vmul.f32 %v485, %v493
        %v501 = vmul.f32 %v483, %v497
        %v502 = vmul.f32 %v486, %v493
        %v503 = vmul.f32 %v484, %v497
        %504 = vset.pattern.permute.xlu0 1
        %505 = vperm.xlu0 %504, %v411
        %v506 = vpop.permute.xlu0 %505
        %508 = vset.pattern.permute.xlu0 1
        %509 = vperm.xlu0 %508, %v412
        %v510 = vpop.permute.xlu0 %509
        %v512 = vmul.f32 %v500, %v506
        %v513 = vmul.f32 %v501, %v506
        %v514 = vmul.f32 %v502, %v510
        %v515 = vmul.f32 %v503, %v510
        %v516 = vadd.f32 %v470, %v512
        %v517 = vadd.f32 %v471, %v513
        %v518 = vadd.f32 %v472, %v514
        %v519 = vadd.f32 %v473, %v515
        %520 = vrot.lane.b32.xlu0 %v407, 15
        %v521 = vpop.permute.xlu0 %520
        %522 = vrot.lane.b32.xlu0 %v409, 15
        %v523 = vpop.permute.xlu0 %522
        %524 = vrot.lane.b32.xlu0 %v408, 15
        %v525 = vpop.permute.xlu0 %524
        %526 = vrot.lane.b32.xlu0 %v410, 15
        %v527 = vpop.permute.xlu0 %526
        %vm528 = vcmp.lt.s32.totalorder %v436, 15
        %v529 = vsel %vm528, %v521, %v525
        %v530 = vsel %vm528, %v523, %v527
        %v531 = vsel %vm528, %v525, %v521
        %v532 = vsel %vm528, %v527, %v523
        %s533 = scalar_lea.vmem %s3, 4
        %v534 = vld [vmem:[%s533] sm:$0x3]
        %v536 = vlaneseq
        %v537 = vshrl.u32 %v536, 7
        %v538 = vsub.s32 0, %v537
        %v539 = vrot.slane %v534, %v538
        %v540 = vlaneseq
        %v541 = vshrl.u32 %v540, 7
        %v542 = vsub.s32 1, %v541
        %v543 = vrot.slane %v534, %v542
        %v546 = vmul.f32 %v531, %v539
        %v547 = vmul.f32 %v529, %v543
        %v548 = vmul.f32 %v532, %v539
        %v549 = vmul.f32 %v530, %v543
        %550 = vset.pattern.permute.xlu0 2
        %551 = vperm.xlu0 %550, %v411
        %v552 = vpop.permute.xlu0 %551
        %554 = vset.pattern.permute.xlu0 2
        %555 = vperm.xlu0 %554, %v412
        %v556 = vpop.permute.xlu0 %555
        %v558 = vmul.f32 %v546, %v552
        %v559 = vmul.f32 %v547, %v552
        %v560 = vmul.f32 %v548, %v556
        %v561 = vmul.f32 %v549, %v556
        %v562 = vadd.f32 %v516, %v558
        %v563 = vadd.f32 %v517, %v559
        %v564 = vadd.f32 %v518, %v560
        %v565 = vadd.f32 %v519, %v561
        %566 = vrot.lane.b32.xlu0 %v407, 1
        %v567 = vpop.permute.xlu0 %566
        %568 = vrot.lane.b32.xlu0 %v409, 1
        %v569 = vpop.permute.xlu0 %568
        %570 = vrot.lane.b32.xlu0 %v408, 1
        %v571 = vpop.permute.xlu0 %570
        %572 = vrot.lane.b32.xlu0 %v410, 1
        %v573 = vpop.permute.xlu0 %572
        %vm574 = vcmp.lt.s32.totalorder %v436, 1
        %v575 = vsel %vm574, %v567, %v571
        %v576 = vsel %vm574, %v569, %v573
        %v577 = vsel %vm574, %v571, %v567
        %v578 = vsel %vm574, %v573, %v569
        %s579 = scalar_lea.vmem %s3, 6
        %v580 = vld [vmem:[%s579] sm:$0x3]
        %v582 = vlaneseq
        %v583 = vshrl.u32 %v582, 7
        %v584 = vsub.s32 0, %v583
        %v585 = vrot.slane %v580, %v584
        %v586 = vlaneseq
        %v587 = vshrl.u32 %v586, 7
        %v588 = vsub.s32 1, %v587
        %v589 = vrot.slane %v580, %v588
        %v592 = vmul.f32 %v577, %v585
        %v593 = vmul.f32 %v575, %v589
        %v594 = vmul.f32 %v578, %v585
        %v595 = vmul.f32 %v576, %v589
        %596 = vset.pattern.permute.xlu0 3
        %597 = vperm.xlu0 %596, %v411
        %v598 = vpop.permute.xlu0 %597
        %600 = vset.pattern.permute.xlu0 3
        %601 = vperm.xlu0 %600, %v412
        %v602 = vpop.permute.xlu0 %601
        %v604 = vmul.f32 %v592, %v598
        %v605 = vmul.f32 %v593, %v598
        %v606 = vmul.f32 %v594, %v602
        %v607 = vmul.f32 %v595, %v602
        %v608 = vadd.f32 %v562, %v604
        %v609 = vadd.f32 %v563, %v605
        %v610 = vadd.f32 %v564, %v606
        %v611 = vadd.f32 %v565, %v607
        %612 = vrot.lane.b32.xlu0 %v407, 127
        %v613 = vpop.permute.xlu0 %612
        %614 = vrot.lane.b32.xlu0 %v409, 127
        %v615 = vpop.permute.xlu0 %614
        %616 = vrot.lane.b32.xlu0 %v408, 127
        %v617 = vpop.permute.xlu0 %616
        %618 = vrot.lane.b32.xlu0 %v410, 127
        %v619 = vpop.permute.xlu0 %618
        %vm620 = vcmp.lt.s32.totalorder %v436, 127
        %v621 = vsel %vm620, %v613, %v617
        %v622 = vsel %vm620, %v615, %v619
        %v623 = vsel %vm620, %v617, %v613
        %v624 = vsel %vm620, %v619, %v615
        %s625 = scalar_lea.vmem %s3, 10
        %v626 = vld [vmem:[%s625] sm:$0x3]
        %v628 = vlaneseq
        %v629 = vshrl.u32 %v628, 7
        %v630 = vsub.s32 0, %v629
        %v631 = vrot.slane %v626, %v630
        %v632 = vlaneseq
        %v633 = vshrl.u32 %v632, 7
        %v634 = vsub.s32 1, %v633
        %v635 = vrot.slane %v626, %v634
        %v638 = vmul.f32 %v621, %v631
        %v639 = vmul.f32 %v623, %v635
        %v640 = vmul.f32 %v622, %v631
        %v641 = vmul.f32 %v624, %v635
        %642 = vset.pattern.permute.xlu0 5
        %643 = vperm.xlu0 %642, %v411
        %v644 = vpop.permute.xlu0 %643
        %646 = vset.pattern.permute.xlu0 5
        %647 = vperm.xlu0 %646, %v412
        %v648 = vpop.permute.xlu0 %647
        %v650 = vmul.f32 %v638, %v644
        %v651 = vmul.f32 %v639, %v644
        %v652 = vmul.f32 %v640, %v648
        %v653 = vmul.f32 %v641, %v648
        %v654 = vadd.f32 %v608, %v650
        %v655 = vadd.f32 %v609, %v651
        %v656 = vadd.f32 %v610, %v652
        %v657 = vadd.f32 %v611, %v653
        %658 = vrot.lane.b32.xlu0 %v407, 113
        %v659 = vpop.permute.xlu0 %658
        %660 = vrot.lane.b32.xlu0 %v409, 113
        %v661 = vpop.permute.xlu0 %660
        %662 = vrot.lane.b32.xlu0 %v408, 113
        %v663 = vpop.permute.xlu0 %662
        %664 = vrot.lane.b32.xlu0 %v410, 113
        %v665 = vpop.permute.xlu0 %664
        %vm666 = vcmp.lt.s32.totalorder %v436, 113
        %v667 = vsel %vm666, %v659, %v663
        %v668 = vsel %vm666, %v661, %v665
        %v669 = vsel %vm666, %v663, %v659
        %v670 = vsel %vm666, %v665, %v661
        %s671 = scalar_lea.vmem %s3, 12
        %v672 = vld [vmem:[%s671] sm:$0x3]
        %v674 = vlaneseq
        %v675 = vshrl.u32 %v674, 7
        %v676 = vsub.s32 0, %v675
        %v677 = vrot.slane %v672, %v676
        %v678 = vlaneseq
        %v679 = vshrl.u32 %v678, 7
        %v680 = vsub.s32 1, %v679
        %v681 = vrot.slane %v672, %v680
        %v684 = vmul.f32 %v667, %v677
        %v685 = vmul.f32 %v669, %v681
        %v686 = vmul.f32 %v668, %v677
        %v687 = vmul.f32 %v670, %v681
        %688 = vset.pattern.permute.xlu0 6
        %689 = vperm.xlu0 %688, %v411
        %v690 = vpop.permute.xlu0 %689
        %692 = vset.pattern.permute.xlu0 6
        %693 = vperm.xlu0 %692, %v412
        %v694 = vpop.permute.xlu0 %693
        %v696 = vmul.f32 %v684, %v690
        %v697 = vmul.f32 %v685, %v690
        %v698 = vmul.f32 %v686, %v694
        %v699 = vmul.f32 %v687, %v694
        %v700 = vadd.f32 %v654, %v696
        %v701 = vadd.f32 %v655, %v697
        %v702 = vadd.f32 %v656, %v698
        %v703 = vadd.f32 %v657, %v699
        %704 = vrot.lane.b32.xlu0 %v407, 112
        %v705 = vpop.permute.xlu0 %704
        %706 = vrot.lane.b32.xlu0 %v409, 112
        %v707 = vpop.permute.xlu0 %706
        %708 = vrot.lane.b32.xlu0 %v408, 112
        %v709 = vpop.permute.xlu0 %708
        %710 = vrot.lane.b32.xlu0 %v410, 112
        %v711 = vpop.permute.xlu0 %710
        %vm712 = vcmp.lt.s32.totalorder %v436, 112
        %v713 = vsel %vm712, %v705, %v709
        %v714 = vsel %vm712, %v707, %v711
        %v715 = vsel %vm712, %v709, %v705
        %v716 = vsel %vm712, %v711, %v707
        %s717 = scalar_lea.vmem %s3, 14
        %v718 = vld [vmem:[%s717] sm:$0x3]
        %v720 = vlaneseq
        %v721 = vshrl.u32 %v720, 7
        %v722 = vsub.s32 0, %v721
        %v723 = vrot.slane %v718, %v722
        %v724 = vlaneseq
        %v725 = vshrl.u32 %v724, 7
        %v726 = vsub.s32 1, %v725
        %v727 = vrot.slane %v718, %v726
        %v730 = vmul.f32 %v713, %v723
        %v731 = vmul.f32 %v715, %v727
        %v732 = vmul.f32 %v714, %v723
        %v733 = vmul.f32 %v716, %v727
        %734 = vset.pattern.permute.xlu0 7
        %735 = vperm.xlu0 %734, %v411
        %v736 = vpop.permute.xlu0 %735
        %738 = vset.pattern.permute.xlu0 7
        %739 = vperm.xlu0 %738, %v412
        %v740 = vpop.permute.xlu0 %739
        %v742 = vmul.f32 %v730, %v736
        %v743 = vmul.f32 %v731, %v736
        %v744 = vmul.f32 %v732, %v740
        %v745 = vmul.f32 %v733, %v740
        %v746 = vadd.f32 %v700, %v742
        %v747 = vadd.f32 %v701, %v743
        %v748 = vadd.f32 %v702, %v744
        %v749 = vadd.f32 %v703, %v745
        %750 = vrot.lane.b32.xlu0 %v407, 111
        %v751 = vpop.permute.xlu0 %750
        %752 = vrot.lane.b32.xlu0 %v409, 111
        %v753 = vpop.permute.xlu0 %752
        %754 = vrot.lane.b32.xlu0 %v408, 111
        %v755 = vpop.permute.xlu0 %754
        %756 = vrot.lane.b32.xlu0 %v410, 111
        %v757 = vpop.permute.xlu0 %756
        %vm758 = vcmp.lt.s32.totalorder %v436, 111
        %v759 = vsel %vm758, %v751, %v755
        %v760 = vsel %vm758, %v753, %v757
        %v761 = vsel %vm758, %v755, %v751
        %v762 = vsel %vm758, %v757, %v753
        %s763 = scalar_lea.vmem %s3, 16
        %v764 = vld [vmem:[%s763] sm:$0x3]
        %v766 = vlaneseq
        %v767 = vshrl.u32 %v766, 7
        %v768 = vsub.s32 0, %v767
        %v769 = vrot.slane %v764, %v768
        %v770 = vlaneseq
        %v771 = vshrl.u32 %v770, 7
        %v772 = vsub.s32 1, %v771
        %v773 = vrot.slane %v764, %v772
        %v776 = vmul.f32 %v759, %v769
        %v777 = vmul.f32 %v761, %v773
        %v778 = vmul.f32 %v760, %v769
        %v779 = vmul.f32 %v762, %v773
        %780 = vset.pattern.permute.xlu0 8
        %781 = vperm.xlu0 %780, %v411
        %v782 = vpop.permute.xlu0 %781
        %784 = vset.pattern.permute.xlu0 8
        %785 = vperm.xlu0 %784, %v412
        %v786 = vpop.permute.xlu0 %785
        %v788 = vmul.f32 %v776, %v782
        %v789 = vmul.f32 %v777, %v782
        %v790 = vmul.f32 %v778, %v786
        %v791 = vmul.f32 %v779, %v786
        %v792 = vadd.f32 %v746, %v788
        %v793 = vadd.f32 %v747, %v789
        %v794 = vadd.f32 %v748, %v790
        %v795 = vadd.f32 %v749, %v791
        %v796 = vld [vmem:[%s5] sm:$0xff]
        %v797 = vld [vmem:[%s5 + $0x8] sm:$0xff]
        %799 = vset.pattern.permute.xlu0 0
        %800 = vperm.xlu0 %799, %v796
        %v801 = vpop.permute.xlu0 %800
        %804 = vset.pattern.permute.xlu0 0
        %805 = vperm.xlu0 %804, %v797
        %v806 = vpop.permute.xlu0 %805
        %v808 = vadd.f32 %v792, %v801
        %v809 = vadd.f32 %v793, %v801
        %v810 = vadd.f32 %v794, %v806
        %v811 = vadd.f32 %v795, %v806
        %v812 = vld [vmem:[%s6] sm:$0xff]
        %v813 = vld [vmem:[%s6 + $0x8] sm:$0xff]
        %v814 = vld [vmem:[%s7] sm:$0xff]
        %v815 = vld [vmem:[%s7 + $0x8] sm:$0xff]
        %817 = vset.pattern.permute.xlu0 0
        %818 = vperm.xlu0 %817, %v814
        %v819 = vpop.permute.xlu0 %818
        %822 = vset.pattern.permute.xlu0 0
        %823 = vperm.xlu0 %822, %v815
        %v824 = vpop.permute.xlu0 %823
        %vm826 = vcmask 195584
        %v828 = vsel %vm826, %v812, 0
        %v831 = vsel %vm826, %v813, 0
        %833 = vmatprep.subr.mxu0 0.0
        %834 = vmatpush1.msra.mxu0 0.0
        %835 = vmatprep.subr.mxu0 0.0
        %836 = vmatpush1.msra.mxu0 0.0
        %837 = vmatprep.subr.mxu0 0.0
        %838 = vmatpush1.msra.mxu0 0.0
        %839 = vmatprep.subr.mxu0 0.0
        %840 = vmatpush1.msra.mxu0 0.0
        %841 = vmatprep.subr.mxu0 0.0
        %842 = vmatpush1.msra.mxu0 0.0
        %843 = vmatprep.subr.mxu0 0.0
        %844 = vmatpush1.msra.mxu0 0.0
        %845 = vmatprep.subr.mxu0 0.0
        %846 = vmatpush1.msra.mxu0 0.0
        %847 = vmatprep.subr.mxu0 0.0
        %848 = vmatpush1.msra.mxu0 0.0
        %849 = vmatprep.subr.mxu0 0.0
        %850 = vmatpush1.msra.mxu0 0.0
        %851 = vmatprep.subr.mxu0 0.0
        %852 = vmatpush1.msra.mxu0 0.0
        %853 = vmatprep.subr.mxu0 0.0
        %854 = vmatpush1.msra.mxu0 0.0
        %855 = vmatprep.subr.mxu0 0.0
        %856 = vmatpush1.msra.mxu0 0.0
        %857 = vmatprep.subr.mxu0 0.0
        %858 = vmatpush1.msra.mxu0 0.0
        %859 = vmatprep.subr.mxu0 %v308
        %860 = vmatpush1.msra.mxu0 %v307
        %861 = vmatprep.subr.mxu0 %v811
        %862 = vmatpush1.msra.mxu0 %v810
        %863 = vmatprep.subr.mxu0 %v809
        %864 = vmatpush1.msra.mxu0 %v808
        %865 = vmatprep.subr.mxu0 0.0
        %866 = vmatpush2.msra.mxu0 0.0
        %867 = vmatprep.subr.mxu0 0.0
        %868 = vmatpush2.msra.mxu0 0.0
        %869 = vmatprep.subr.mxu0 0.0
        %870 = vmatpush2.msra.mxu0 0.0
        %871 = vmatprep.subr.mxu0 0.0
        %872 = vmatpush2.msra.mxu0 0.0
        %873 = vmatprep.subr.mxu0 0.0
        %874 = vmatpush2.msra.mxu0 0.0
        %875 = vmatprep.subr.mxu0 0.0
        %876 = vmatpush2.msra.mxu0 0.0
        %877 = vmatprep.subr.mxu0 0.0
        %878 = vmatpush2.msra.mxu0 0.0
        %879 = vmatprep.subr.mxu0 0.0
        %880 = vmatpush2.msra.mxu0 0.0
        %881 = vmatprep.subr.mxu0 0.0
        %882 = vmatpush2.msra.mxu0 0.0
        %883 = vmatprep.subr.mxu0 0.0
        %884 = vmatpush2.msra.mxu0 0.0
        %885 = vmatprep.subr.mxu0 0.0
        %886 = vmatpush2.msra.mxu0 0.0
        %887 = vmatprep.subr.mxu0 0.0
        %888 = vmatpush2.msra.mxu0 0.0
        %889 = vmatprep.subr.mxu0 0.0
        %890 = vmatpush2.msra.mxu0 0.0
        %891 = vmatprep.subr.mxu0 0.0
        %892 = vmatpush2.msra.mxu0 0.0
        %893 = vmatprep.subr.mxu0 0.0
        %894 = vmatpush2.msra.mxu0 0.0
        %895 = vmatprep.subr.mxu0 0.0
        %896 = vmatpush2.msra.mxu0 0.0
        %897 = vmatprep.mubr.f32.mxu0 0.0
        %898 = vmatmul.mubr.f32.gmra.mxu0 %v828
        %v899 = vpop.f32.mrf.mxu0
        %v900 = vadd.f32 %v819, %v899
        %v901 = vpop.f32.mrf.mxu0
        %v902 = vadd.f32 %v819, %v901
        %903 = vmatprep.mubr.f32.mxu0 0.0
        %904 = vmatmul.mubr.f32.gmra.mxu0 %v831
        %v905 = vpop.f32.mrf.mxu0
        %v906 = vadd.f32 %v824, %v905
        %v907 = vpop.f32.mrf.mxu0
        %v908 = vadd.f32 %v824, %v907
        %909 = vdwg.mxu0
        %v910 = vmax.f32 %v900, 0.0
        %v911 = vmax.f32 %v902, 0.0
        %v912 = vmax.f32 %v906, 0.0
        %v913 = vmax.f32 %v908, 0.0
        %914 = vst [vmem:[%s299] sm:$0xff] %v910
        %915 = vst [vmem:[%s299 + $0x8] sm:$0xff] %v911
        %916 = vst [vmem:[%s299 + $0x10] sm:$0xff] %v912
        %917 = vst [vmem:[%s299 + $0x18] sm:$0xff] %v913
        %s918 = sand.u32 %s203, 1
        %s919 = scalar_lea.sflag [#allocation3], %s918
        %s920 = sand.u32 %s203, 1
        %s921 = smul.addr %s920, 32
        %s922 = scalar_lea.vmem [#allocation2], %s921
        // Predicated region
        $region53: #{tpu_custom_call.1} parent=51 // pred_check
          %p923 = pneg %p213
        $region54: #{tpu_custom_call.1} parent=51 // pred_check_branch
          %925 = sbr.rel (%p923) target = $region56
        $region55: #{tpu_custom_call.1} parent=51 // pred_region
          %s926 = smul.u32 2, %s22
          %s928 = ssub.s32 512, 512
          %929 = vsyncadd %s919, %s928
          %s930 = smul.addr %s926, 128
          %s931 = scalar_lea.hbm %s8, %s930
          %s932 = sshll.u32 %s922, 4
          %s933 = int_to_ptr.vmem [resolvable:$true] %s932
          %938 = dma.vmem_to_hbm [thread:$0]  %s933, 512, %s931, %s919, 256, 512, 16
        $region56: #{tpu_custom_call.1} parent=51 // pred_fallthru
          _
      $region52: #{tpu_custom_call.1} parent=5 // pred_fallthru
        _
      %p939 = scmp.le.s32.totalorder 2, %s17
      // Predicated region
      $region57: #{tpu_custom_call.1} parent=5 // pred_check
        %p940 = pneg %p939
      $region58: #{tpu_custom_call.1} parent=5 // pred_check_branch
        %942 = sbr.rel (%p940) target = $region60
      $region59: #{tpu_custom_call.1} parent=5 // pred_region
        %s943 = ssub.s32 %s17, 2
        // Predicated region
        $region61: #{tpu_custom_call.1} parent=59 // pred_check
          %p944 = pneg %p219
        $region62: #{tpu_custom_call.1} parent=59 // pred_check_branch
          %946 = sbr.rel (%p944) target = $region64
        $region63: #{tpu_custom_call.1} parent=59 // pred_region
          %s947 = sand.u32 %s204, 1
          %s948 = scalar_lea.sflag [#allocation3], %s947
          %s949 = sand.u32 %s204, 1
          %s950 = smul.addr %s949, 32
          %s951 = scalar_lea.vmem [#allocation2], %s950
          %952 = dma.done %s948, 512
        $region64: #{tpu_custom_call.1} parent=59 // pred_fallthru
          _
      $region60: #{tpu_custom_call.1} parent=5 // pred_fallthru
        _
    $region6: #{tpu_custom_call.1} parent=1 // loop_footer
      %s21 = sadd.s32 1, %s17
    $region7: #{tpu_custom_call.1} parent=1 // loop_footer_branch
      %16 = sbr.rel target = $region3
    $region8: #{tpu_custom_call.1} parent=1 // loop_exit
      _
    %953 = vsyncpa [#allocation3], 1
    %s954 = scalar_lea.sflag [#allocation3], 1
    %955 = vsyncpa %s954, 1

</llo_original>
